<compile_context>
chip_gen: v6e
topology: v6e:2x2x1
jax: 0.10.0
libtpu: 0.0.40
codegen_flags: <defaults>
</compile_context>

<pallas_src>
import functools

import jax
import jax.numpy as jnp
import numpy as np
from jax.experimental import pallas as pl
from jax.experimental.pallas import tpu as pltpu


def basic_block_kernel(x_ref, mask_ref, w1_ref, b1_ref, w2_ref, b2_ref, out_ref,
                       *, H, W, nb, mxu_dtype):
    # Per grid step (nb lane-concatenated images):
    #   x_ref   : (1, Cp, L)   input (channels padded to Cp sublanes), L = nb*H*W
    #   mask_ref: (8, Cp, L)   0/1 validity masks for the 8 non-center taps
    #   w1_ref  : (Cp, 9*Cp)   conv1 weight, tap-major, BN1 scale pre-folded
    #   b1_ref  : (Cp, 1)      BN1 shift (f32)
    #   w2_ref  : (Cp, 9*Cp)   conv2 weight, tap-major, BN2 scale pre-folded
    #   b2_ref  : (Cp, 1)      BN2 shift (f32)
    #   out_ref : (1, Cp, L)
    L = nb * H * W
    x = x_ref[0]                                       # (Cp, L) f32

    def conv_bn(a, w_ref, b_ref):
        # im2col via lane rotations; the slab is built in registers from
        # 8-sublane-aligned pieces and fed to a single lane-dense MXU matmul.
        taps = []
        r = 0
        for t in range(9):
            dy, dx = t // 3 - 1, t % 3 - 1
            if dy == 0 and dx == 0:
                taps.append(a)                         # centre tap: always valid
            else:
                off = dy * W + dx                      # flat-spatial tap offset
                # NOTE: 0/1-mask multiply; use jnp.where if inputs may be non-finite.
                taps.append(pltpu.roll(a, (-off) % L, axis=1) * mask_ref[r])
                r += 1
        # Concatenate in f32 (aligned sublane pieces), then cast once for the MXU.
        slab = jnp.concatenate(taps, axis=0).astype(mxu_dtype)   # (9*Cp, L)
        z = jnp.dot(w_ref[...], slab, preferred_element_type=jnp.float32)
        return z + b_ref[...]                          # f32 per-channel shift

    # conv1 (BN1 scale folded) -> + shift -> ReLU
    a1 = jnp.maximum(conv_bn(x, w1_ref, b1_ref), 0.0)
    # conv2 (BN2 scale folded) -> + shift -> + residual -> ReLU
    out_ref[0] = jnp.maximum(conv_bn(a1, w2_ref, b2_ref) + x, 0.0)


def _default_images_per_step(n, hw):
    """Widen the lane extent (amortize the ~600-cycle per-step overhead and the
    MXU push/pop latency) while keeping >= 2 grid steps (both v7x TensorCores
    busy) and modest register pressure."""
    nb = 1
    for cand in range(2, n + 1):
        if cand * hw > 1024:
            break
        if n % cand:
            continue
        if n >= 2 and n // cand < 2:
            continue
        nb = cand
    return nb


@functools.partial(jax.jit, static_argnames=("images_per_step", "mxu_dtype"))
def basic_block(x_nchw, w1, g1, be1, m1, v1, w2, g2, be2, m2, v2, *,
                images_per_step=None, mxu_dtype=jnp.bfloat16, eps=1e-5):
    """BasicBlock forward (stride=1, downsample=None, eval-mode BN).

    x_nchw: (N, C, H, W) float32; conv weights in PyTorch OIHW layout.
    mxu_dtype: dtype of the MXU operands (tap slab + folded weights); all
      elementwise math (masks, BN shift, ReLU, residual) stays float32.
    """
    N, Cin, H, W = x_nchw.shape
    C = w1.shape[0]
    assert Cin == C, "identity residual requires inplanes == planes"
    HW = H * W
    Cp = ((C + 7) // 8) * 8                 # pad channels to full 8-sublane tiles

    nb = images_per_step or _default_images_per_step(N, HW)
    assert N % nb == 0, "images_per_step must divide the batch"
    G = N // nb
    L = nb * HW                             # lanes per grid step

    # (N,C,H,W) -> (G, Cp, L): images lane-concatenated, channels zero-padded.
    xf = (x_nchw.astype(jnp.float32)
          .reshape(G, nb, C, HW).transpose(0, 2, 1, 3).reshape(G, C, L))
    xf = jnp.pad(xf, ((0, 0), (0, Cp - C), (0, 0)))

    # Per-tap validity masks: conv zero-padding + kill lanes that the lane
    # rotation would wrap across row / image boundaries.  Built once (host
    # constants), DMA'd once, resident across all grid steps.
    p = np.arange(L)
    hh = (p % HW) // W
    ww = (p % HW) % W
    rows = []
    for t in range(9):
        dy, dx = t // 3 - 1, t % 3 - 1
        if dy == 0 and dx == 0:
            continue
        valid = ((hh + dy >= 0) & (hh + dy < H) & (ww + dx >= 0) & (ww + dx < W))
        rows.append(np.broadcast_to(valid.astype(np.float32), (Cp, L)))
    masks = jnp.asarray(np.stack(rows))                     # (8, Cp, L)

    # Fold eval-mode BN into (scale, shift); fold the scale into the conv
    # weights (conv has no bias, so this is exact).  Weight column t*Cp + c_in
    # matches slab row t*Cp + c_in (tap-major, channel-padded).
    s1 = g1 / jnp.sqrt(v1 + eps)
    s2 = g2 / jnp.sqrt(v2 + eps)
    b1 = jnp.zeros((Cp, 1), jnp.float32).at[:C, 0].set(be1 - m1 * s1)
    b2 = jnp.zeros((Cp, 1), jnp.float32).at[:C, 0].set(be2 - m2 * s2)

    def fold_weight(w, s):
        wt = jnp.transpose(w.astype(jnp.float32), (0, 2, 3, 1)) * s[:, None, None, None]
        wp = jnp.zeros((Cp, 3, 3, Cp), jnp.float32).at[:C, :, :, :C].set(wt)
        return wp.reshape(Cp, 9 * Cp).astype(mxu_dtype)

    w1e = fold_weight(w1, s1)
    w2e = fold_weight(w2, s2)

    kernel = functools.partial(basic_block_kernel, H=H, W=W, nb=nb,
                               mxu_dtype=mxu_dtype)
    out = pl.pallas_call(
        kernel,
        out_shape=jax.ShapeDtypeStruct((G, Cp, L), jnp.float32),
        grid_spec=pltpu.PrefetchScalarGridSpec(
            num_scalar_prefetch=0,
            grid=(G,),
            in_specs=[
                pl.BlockSpec((1, Cp, L), lambda g: (g, 0, 0)),   # x (also residual)
                pl.BlockSpec((8, Cp, L), lambda g: (0, 0, 0)),   # tap masks
                pl.BlockSpec((Cp, 9 * Cp), lambda g: (0, 0)),    # conv1 * bn1 scale
                pl.BlockSpec((Cp, 1), lambda g: (0, 0)),         # bn1 shift
                pl.BlockSpec((Cp, 9 * Cp), lambda g: (0, 0)),    # conv2 * bn2 scale
                pl.BlockSpec((Cp, 1), lambda g: (0, 0)),         # bn2 shift
            ],
            out_specs=pl.BlockSpec((1, Cp, L), lambda g: (g, 0, 0)),
        ),
        compiler_params=pltpu.CompilerParams(
            dimension_semantics=("parallel",),
        ),
    )(xf, masks, w1e, b1, w2e, b2)

    # Drop channel padding and un-concatenate the lane-packed images.
    return (out[:, :C, :]
            .reshape(G, C, nb, HW).transpose(0, 2, 1, 3).reshape(N, C, H, W))


def basic_block_ref(x, w1, g1, be1, m1, v1, w2, g2, be2, m2, v2, eps=1e-5):
    """Pure-JAX reference with the same (eval-mode BN) semantics."""
    def conv(t, w):
        return jax.lax.conv_general_dilated(
            t, w, window_strides=(1, 1), padding=((1, 1), (1, 1)),
            dimension_numbers=("NCHW", "OIHW", "NCHW"),
            precision=jax.lax.Precision.HIGHEST)

    def bn(t, g, b, m, v):
        inv = g / jnp.sqrt(v + eps)
        return t * inv[None, :, None, None] + (b - m * inv)[None, :, None, None]

    h = jax.nn.relu(bn(conv(x, w1), g1, be1, m1, v1))
    return jax.nn.relu(bn(conv(h, w2), g2, be2, m2, v2) + x)


if __name__ == "__main__":
    # Small shapes consistent with a CIFAR ResNet BasicBlock:
    # batch=2, inplanes=planes=4, spatial=16, stride=1, downsample=None.
    N, C, H, W = 2, 4, 16, 16

    key = jax.random.PRNGKey(0)
    ks = jax.random.split(key, 8)

    x = jax.random.normal(ks[0], (N, C, H, W), dtype=jnp.float32)
    w1 = 0.1 * jax.random.normal(ks[1], (C, C, 3, 3), dtype=jnp.float32)
    w2 = 0.1 * jax.random.normal(ks[2], (C, C, 3, 3), dtype=jnp.float32)
    g1 = 1.0 + 0.1 * jax.random.normal(ks[3], (C,), dtype=jnp.float32)
    be1 = 0.1 * jax.random.normal(ks[4], (C,), dtype=jnp.float32)
    m1 = 0.05 * jax.random.normal(ks[5], (C,), dtype=jnp.float32)
    v1 = 1.0 + 0.1 * jnp.abs(jax.random.normal(ks[6], (C,), dtype=jnp.float32))
    g2 = jnp.ones((C,), jnp.float32)
    be2 = jnp.zeros((C,), jnp.float32)
    m2 = 0.05 * jax.random.normal(ks[7], (C,), dtype=jnp.float32)
    v2 = 1.0 + 0.05 * jnp.abs(jax.random.normal(ks[0], (C,), dtype=jnp.float32))

    ref = basic_block_ref(x, w1, g1, be1, m1, v1, w2, g2, be2, m2, v2)

    # 1) Exact path: f32 MXU operands, strict tolerance (N=2 -> one image/step).
    out_f32 = jax.block_until_ready(
        basic_block(x, w1, g1, be1, m1, v1, w2, g2, be2, m2, v2,
                    mxu_dtype=jnp.float32))
    assert out_f32.shape == (N, C, H, W), out_f32.shape
    np.testing.assert_allclose(np.asarray(out_f32), np.asarray(ref),
                               rtol=1e-2, atol=1e-2)

    # 2) Default perf path: bf16 MXU operands + lane-concatenated image batching
    #    (N=8 -> 4 images per grid step, 2 grid steps).
    x8 = jax.random.normal(jax.random.fold_in(key, 123), (8, C, H, W),
                           dtype=jnp.float32)
    out8 = jax.block_until_ready(
        basic_block(x8, w1, g1, be1, m1, v1, w2, g2, be2, m2, v2))
    ref8 = basic_block_ref(x8, w1, g1, be1, m1, v1, w2, g2, be2, m2, v2)
    np.testing.assert_allclose(np.asarray(out8), np.asarray(ref8),
                               rtol=5e-2, atol=5e-2)

    print("KERNEL_OK")
</pallas_src>

<mosaic_0001>
module attributes {stable_mosaic.version = 11 : i64} {
  func.func @basic_block_kernel(%arg0: i32, %arg1: memref<1x8x256xf32, #tpu.memory_space<vmem>>, %arg2: memref<8x8x256xf32, #tpu.memory_space<vmem>>, %arg3: memref<8x72xf32, #tpu.memory_space<vmem>>, %arg4: memref<8x1xf32, #tpu.memory_space<vmem>>, %arg5: memref<8x72xf32, #tpu.memory_space<vmem>>, %arg6: memref<8x1xf32, #tpu.memory_space<vmem>>, %arg7: memref<1x8x256xf32, #tpu.memory_space<vmem>>) attributes {dimension_semantics = [#tpu.dimension_semantics<parallel>], iteration_bounds = array<i64: 2>, scalar_prefetch = 0 : i64, scratch_operands = 0 : i64, tpu.core_type = #tpu.core_type<tc>, window_params = [{transform_indices = @transform_0, window_bounds = array<i64: 1, 8, 256>}, {pipeline_mode = #tpu.pipeline_mode<synchronous>, transform_indices = @transform_1, window_bounds = array<i64: 8, 8, 256>}, {pipeline_mode = #tpu.pipeline_mode<synchronous>, transform_indices = @transform_2, window_bounds = array<i64: 8, 72>}, {pipeline_mode = #tpu.pipeline_mode<synchronous>, transform_indices = @transform_3, window_bounds = array<i64: 8, 1>}, {pipeline_mode = #tpu.pipeline_mode<synchronous>, transform_indices = @transform_4, window_bounds = array<i64: 8, 72>}, {pipeline_mode = #tpu.pipeline_mode<synchronous>, transform_indices = @transform_5, window_bounds = array<i64: 8, 1>}, {transform_indices = @transform_6, window_bounds = array<i64: 1, 8, 256>}]} {
    %c0 = arith.constant 0 : index
    %c0_0 = arith.constant 0 : index
    %c0_1 = arith.constant 0 : index
    %0 = vector.load %arg1[%c0, %c0_0, %c0_1] : memref<1x8x256xf32, #tpu.memory_space<vmem>>, vector<1x8x256xf32>
    %1 = vector.shape_cast %0 : vector<1x8x256xf32> to vector<8x256xf32>
    %c17_i32 = arith.constant 17 : i32
    %2 = tpu.dynamic_rotate %1 by %c17_i32 dim 1 : vector<8x256xf32>, i32 -> vector<8x256xf32>
    %c0_2 = arith.constant 0 : index
    %c0_3 = arith.constant 0 : index
    %c0_4 = arith.constant 0 : index
    %3 = vector.load %arg2[%c0_2, %c0_3, %c0_4] : memref<8x8x256xf32, #tpu.memory_space<vmem>>, vector<1x8x256xf32>
    %4 = vector.shape_cast %3 : vector<1x8x256xf32> to vector<8x256xf32>
    %5 = arith.mulf %2, %4 : vector<8x256xf32>
    %c16_i32 = arith.constant 16 : i32
    %6 = tpu.dynamic_rotate %1 by %c16_i32 dim 1 : vector<8x256xf32>, i32 -> vector<8x256xf32>
    %c1 = arith.constant 1 : index
    %c0_5 = arith.constant 0 : index
    %c0_6 = arith.constant 0 : index
    %7 = vector.load %arg2[%c1, %c0_5, %c0_6] : memref<8x8x256xf32, #tpu.memory_space<vmem>>, vector<1x8x256xf32>
    %8 = vector.shape_cast %7 : vector<1x8x256xf32> to vector<8x256xf32>
    %9 = arith.mulf %6, %8 : vector<8x256xf32>
    %c15_i32 = arith.constant 15 : i32
    %10 = tpu.dynamic_rotate %1 by %c15_i32 dim 1 : vector<8x256xf32>, i32 -> vector<8x256xf32>
    %c2 = arith.constant 2 : index
    %c0_7 = arith.constant 0 : index
    %c0_8 = arith.constant 0 : index
    %11 = vector.load %arg2[%c2, %c0_7, %c0_8] : memref<8x8x256xf32, #tpu.memory_space<vmem>>, vector<1x8x256xf32>
    %12 = vector.shape_cast %11 : vector<1x8x256xf32> to vector<8x256xf32>
    %13 = arith.mulf %10, %12 : vector<8x256xf32>
    %c1_i32 = arith.constant 1 : i32
    %14 = tpu.dynamic_rotate %1 by %c1_i32 dim 1 : vector<8x256xf32>, i32 -> vector<8x256xf32>
    %c3 = arith.constant 3 : index
    %c0_9 = arith.constant 0 : index
    %c0_10 = arith.constant 0 : index
    %15 = vector.load %arg2[%c3, %c0_9, %c0_10] : memref<8x8x256xf32, #tpu.memory_space<vmem>>, vector<1x8x256xf32>
    %16 = vector.shape_cast %15 : vector<1x8x256xf32> to vector<8x256xf32>
    %17 = arith.mulf %14, %16 : vector<8x256xf32>
    %c255_i32 = arith.constant 255 : i32
    %18 = tpu.dynamic_rotate %1 by %c255_i32 dim 1 : vector<8x256xf32>, i32 -> vector<8x256xf32>
    %c4 = arith.constant 4 : index
    %c0_11 = arith.constant 0 : index
    %c0_12 = arith.constant 0 : index
    %19 = vector.load %arg2[%c4, %c0_11, %c0_12] : memref<8x8x256xf32, #tpu.memory_space<vmem>>, vector<1x8x256xf32>
    %20 = vector.shape_cast %19 : vector<1x8x256xf32> to vector<8x256xf32>
    %21 = arith.mulf %18, %20 : vector<8x256xf32>
    %c241_i32 = arith.constant 241 : i32
    %22 = tpu.dynamic_rotate %1 by %c241_i32 dim 1 : vector<8x256xf32>, i32 -> vector<8x256xf32>
    %c5 = arith.constant 5 : index
    %c0_13 = arith.constant 0 : index
    %c0_14 = arith.constant 0 : index
    %23 = vector.load %arg2[%c5, %c0_13, %c0_14] : memref<8x8x256xf32, #tpu.memory_space<vmem>>, vector<1x8x256xf32>
    %24 = vector.shape_cast %23 : vector<1x8x256xf32> to vector<8x256xf32>
    %25 = arith.mulf %22, %24 : vector<8x256xf32>
    %c240_i32 = arith.constant 240 : i32
    %26 = tpu.dynamic_rotate %1 by %c240_i32 dim 1 : vector<8x256xf32>, i32 -> vector<8x256xf32>
    %c6 = arith.constant 6 : index
    %c0_15 = arith.constant 0 : index
    %c0_16 = arith.constant 0 : index
    %27 = vector.load %arg2[%c6, %c0_15, %c0_16] : memref<8x8x256xf32, #tpu.memory_space<vmem>>, vector<1x8x256xf32>
    %28 = vector.shape_cast %27 : vector<1x8x256xf32> to vector<8x256xf32>
    %29 = arith.mulf %26, %28 : vector<8x256xf32>
    %c239_i32 = arith.constant 239 : i32
    %30 = tpu.dynamic_rotate %1 by %c239_i32 dim 1 : vector<8x256xf32>, i32 -> vector<8x256xf32>
    %c7 = arith.constant 7 : index
    %c0_17 = arith.constant 0 : index
    %c0_18 = arith.constant 0 : index
    %31 = vector.load %arg2[%c7, %c0_17, %c0_18] : memref<8x8x256xf32, #tpu.memory_space<vmem>>, vector<1x8x256xf32>
    %32 = vector.shape_cast %31 : vector<1x8x256xf32> to vector<8x256xf32>
    %33 = arith.mulf %30, %32 : vector<8x256xf32>
    %34 = tpu.concatenate %5, %9, %13, %17, %1, %21, %25, %29, %33 in 0 : vector<8x256xf32>, vector<8x256xf32>, vector<8x256xf32>, vector<8x256xf32>, vector<8x256xf32>, vector<8x256xf32>, vector<8x256xf32>, vector<8x256xf32>, vector<8x256xf32> -> vector<72x256xf32>
    %c0_19 = arith.constant 0 : index
    %c0_20 = arith.constant 0 : index
    %35 = vector.load %arg3[%c0_19, %c0_20] : memref<8x72xf32, #tpu.memory_space<vmem>>, vector<8x72xf32>
    %cst = arith.constant dense<0.000000e+00> : vector<8x256xf32>
    %36 = tpu.matmul %35, %34, %cst {dimension_numbers = #tpu.dot_dimension_numbers<[1], [0], [0], [1], [0, 0, 1, 1], [], []>} : vector<8x72xf32>, vector<72x256xf32>, vector<8x256xf32> -> vector<8x256xf32>
    %c0_21 = arith.constant 0 : index
    %c0_22 = arith.constant 0 : index
    %37 = vector.load %arg4[%c0_21, %c0_22] : memref<8x1xf32, #tpu.memory_space<vmem>>, vector<8x1xf32>
    %38 = vector.broadcast %37 : vector<8x1xf32> to vector<8x256xf32>
    %39 = arith.addf %36, %38 : vector<8x256xf32>
    %cst_23 = arith.constant 0.000000e+00 : f32
    %40 = vector.broadcast %cst_23 : f32 to vector<8x256xf32>
    %41 = arith.maximumf %39, %40 : vector<8x256xf32>
    %c17_i32_24 = arith.constant 17 : i32
    %42 = tpu.dynamic_rotate %41 by %c17_i32_24 dim 1 : vector<8x256xf32>, i32 -> vector<8x256xf32>
    %c0_25 = arith.constant 0 : index
    %c0_26 = arith.constant 0 : index
    %c0_27 = arith.constant 0 : index
    %43 = vector.load %arg2[%c0_25, %c0_26, %c0_27] : memref<8x8x256xf32, #tpu.memory_space<vmem>>, vector<1x8x256xf32>
    %44 = vector.shape_cast %43 : vector<1x8x256xf32> to vector<8x256xf32>
    %45 = arith.mulf %42, %44 : vector<8x256xf32>
    %c16_i32_28 = arith.constant 16 : i32
    %46 = tpu.dynamic_rotate %41 by %c16_i32_28 dim 1 : vector<8x256xf32>, i32 -> vector<8x256xf32>
    %c1_29 = arith.constant 1 : index
    %c0_30 = arith.constant 0 : index
    %c0_31 = arith.constant 0 : index
    %47 = vector.load %arg2[%c1_29, %c0_30, %c0_31] : memref<8x8x256xf32, #tpu.memory_space<vmem>>, vector<1x8x256xf32>
    %48 = vector.shape_cast %47 : vector<1x8x256xf32> to vector<8x256xf32>
    %49 = arith.mulf %46, %48 : vector<8x256xf32>
    %c15_i32_32 = arith.constant 15 : i32
    %50 = tpu.dynamic_rotate %41 by %c15_i32_32 dim 1 : vector<8x256xf32>, i32 -> vector<8x256xf32>
    %c2_33 = arith.constant 2 : index
    %c0_34 = arith.constant 0 : index
    %c0_35 = arith.constant 0 : index
    %51 = vector.load %arg2[%c2_33, %c0_34, %c0_35] : memref<8x8x256xf32, #tpu.memory_space<vmem>>, vector<1x8x256xf32>
    %52 = vector.shape_cast %51 : vector<1x8x256xf32> to vector<8x256xf32>
    %53 = arith.mulf %50, %52 : vector<8x256xf32>
    %c1_i32_36 = arith.constant 1 : i32
    %54 = tpu.dynamic_rotate %41 by %c1_i32_36 dim 1 : vector<8x256xf32>, i32 -> vector<8x256xf32>
    %c3_37 = arith.constant 3 : index
    %c0_38 = arith.constant 0 : index
    %c0_39 = arith.constant 0 : index
    %55 = vector.load %arg2[%c3_37, %c0_38, %c0_39] : memref<8x8x256xf32, #tpu.memory_space<vmem>>, vector<1x8x256xf32>
    %56 = vector.shape_cast %55 : vector<1x8x256xf32> to vector<8x256xf32>
    %57 = arith.mulf %54, %56 : vector<8x256xf32>
    %c255_i32_40 = arith.constant 255 : i32
    %58 = tpu.dynamic_rotate %41 by %c255_i32_40 dim 1 : vector<8x256xf32>, i32 -> vector<8x256xf32>
    %c4_41 = arith.constant 4 : index
    %c0_42 = arith.constant 0 : index
    %c0_43 = arith.constant 0 : index
    %59 = vector.load %arg2[%c4_41, %c0_42, %c0_43] : memref<8x8x256xf32, #tpu.memory_space<vmem>>, vector<1x8x256xf32>
    %60 = vector.shape_cast %59 : vector<1x8x256xf32> to vector<8x256xf32>
    %61 = arith.mulf %58, %60 : vector<8x256xf32>
    %c241_i32_44 = arith.constant 241 : i32
    %62 = tpu.dynamic_rotate %41 by %c241_i32_44 dim 1 : vector<8x256xf32>, i32 -> vector<8x256xf32>
    %c5_45 = arith.constant 5 : index
    %c0_46 = arith.constant 0 : index
    %c0_47 = arith.constant 0 : index
    %63 = vector.load %arg2[%c5_45, %c0_46, %c0_47] : memref<8x8x256xf32, #tpu.memory_space<vmem>>, vector<1x8x256xf32>
    %64 = vector.shape_cast %63 : vector<1x8x256xf32> to vector<8x256xf32>
    %65 = arith.mulf %62, %64 : vector<8x256xf32>
    %c240_i32_48 = arith.constant 240 : i32
    %66 = tpu.dynamic_rotate %41 by %c240_i32_48 dim 1 : vector<8x256xf32>, i32 -> vector<8x256xf32>
    %c6_49 = arith.constant 6 : index
    %c0_50 = arith.constant 0 : index
    %c0_51 = arith.constant 0 : index
    %67 = vector.load %arg2[%c6_49, %c0_50, %c0_51] : memref<8x8x256xf32, #tpu.memory_space<vmem>>, vector<1x8x256xf32>
    %68 = vector.shape_cast %67 : vector<1x8x256xf32> to vector<8x256xf32>
    %69 = arith.mulf %66, %68 : vector<8x256xf32>
    %c239_i32_52 = arith.constant 239 : i32
    %70 = tpu.dynamic_rotate %41 by %c239_i32_52 dim 1 : vector<8x256xf32>, i32 -> vector<8x256xf32>
    %c7_53 = arith.constant 7 : index
    %c0_54 = arith.constant 0 : index
    %c0_55 = arith.constant 0 : index
    %71 = vector.load %arg2[%c7_53, %c0_54, %c0_55] : memref<8x8x256xf32, #tpu.memory_space<vmem>>, vector<1x8x256xf32>
    %72 = vector.shape_cast %71 : vector<1x8x256xf32> to vector<8x256xf32>
    %73 = arith.mulf %70, %72 : vector<8x256xf32>
    %74 = tpu.concatenate %45, %49, %53, %57, %41, %61, %65, %69, %73 in 0 : vector<8x256xf32>, vector<8x256xf32>, vector<8x256xf32>, vector<8x256xf32>, vector<8x256xf32>, vector<8x256xf32>, vector<8x256xf32>, vector<8x256xf32>, vector<8x256xf32> -> vector<72x256xf32>
    %c0_56 = arith.constant 0 : index
    %c0_57 = arith.constant 0 : index
    %75 = vector.load %arg5[%c0_56, %c0_57] : memref<8x72xf32, #tpu.memory_space<vmem>>, vector<8x72xf32>
    %cst_58 = arith.constant dense<0.000000e+00> : vector<8x256xf32>
    %76 = tpu.matmul %75, %74, %cst_58 {dimension_numbers = #tpu.dot_dimension_numbers<[1], [0], [0], [1], [0, 0, 1, 1], [], []>} : vector<8x72xf32>, vector<72x256xf32>, vector<8x256xf32> -> vector<8x256xf32>
    %c0_59 = arith.constant 0 : index
    %c0_60 = arith.constant 0 : index
    %77 = vector.load %arg6[%c0_59, %c0_60] : memref<8x1xf32, #tpu.memory_space<vmem>>, vector<8x1xf32>
    %78 = vector.broadcast %77 : vector<8x1xf32> to vector<8x256xf32>
    %79 = arith.addf %76, %78 : vector<8x256xf32>
    %80 = arith.addf %79, %1 : vector<8x256xf32>
    %cst_61 = arith.constant 0.000000e+00 : f32
    %81 = vector.broadcast %cst_61 : f32 to vector<8x256xf32>
    %82 = arith.maximumf %80, %81 : vector<8x256xf32>
    %c0_62 = arith.constant 0 : index
    %c0_63 = arith.constant 0 : index
    %c0_64 = arith.constant 0 : index
    %83 = vector.load %arg7[%c0_62, %c0_63, %c0_64] : memref<1x8x256xf32, #tpu.memory_space<vmem>>, vector<1x8x256xf32>
    %84 = vector.shape_cast %83 : vector<1x8x256xf32> to vector<8x256xf32>
    %85 = vector.shape_cast %82 : vector<8x256xf32> to vector<1x8x256xf32>
    tpu.vector_store %arg7[%c0_62, %c0_63, %c0_64], %85 {strides = array<i32>} : memref<1x8x256xf32, #tpu.memory_space<vmem>>, vector<1x8x256xf32>,
    return
  }
  func.func @transform_0(%arg0: i32) -> (i32, i32, i32) {
    %c0_i32 = arith.constant 0 : i32
    %c0_i32_0 = arith.constant 0 : i32
    %c0_i32_1 = arith.constant 0 : i32
    return %arg0, %c0_i32, %c0_i32_0 : i32, i32, i32
  }
  func.func @transform_1(%arg0: i32) -> (i32, i32, i32) {
    %c0_i32 = arith.constant 0 : i32
    %c0_i32_0 = arith.constant 0 : i32
    %c0_i32_1 = arith.constant 0 : i32
    %c0_i32_2 = arith.constant 0 : i32
    return %c0_i32, %c0_i32_0, %c0_i32_1 : i32, i32, i32
  }
  func.func @transform_2(%arg0: i32) -> (i32, i32) {
    %c0_i32 = arith.constant 0 : i32
    %c0_i32_0 = arith.constant 0 : i32
    %c0_i32_1 = arith.constant 0 : i32
    return %c0_i32, %c0_i32_0 : i32, i32
  }
  func.func @transform_3(%arg0: i32) -> (i32, i32) {
    %c0_i32 = arith.constant 0 : i32
    %c0_i32_0 = arith.constant 0 : i32
    %c0_i32_1 = arith.constant 0 : i32
    return %c0_i32, %c0_i32_0 : i32, i32
  }
  func.func @transform_4(%arg0: i32) -> (i32, i32) {
    %c0_i32 = arith.constant 0 : i32
    %c0_i32_0 = arith.constant 0 : i32
    %c0_i32_1 = arith.constant 0 : i32
    return %c0_i32, %c0_i32_0 : i32, i32
  }
  func.func @transform_5(%arg0: i32) -> (i32, i32) {
    %c0_i32 = arith.constant 0 : i32
    %c0_i32_0 = arith.constant 0 : i32
    %c0_i32_1 = arith.constant 0 : i32
    return %c0_i32, %c0_i32_0 : i32, i32
  }
  func.func @transform_6(%arg0: i32) -> (i32, i32, i32) {
    %c0_i32 = arith.constant 0 : i32
    %c0_i32_0 = arith.constant 0 : i32
    %c0_i32_1 = arith.constant 0 : i32
    return %arg0, %c0_i32, %c0_i32_0 : i32, i32, i32
  }
}

</mosaic_0001>

<llo_original>
// kernel: basic_block.1
$region0: #{basic_block.1}
  #allocation0 [shape = 'u32[]', space=smem, size = 0x4, offset = 0x4, fixed_abs, tag = 'smem constant byte address 0x4 - core index']
  #allocation1 [shape = 'u32[144,128]{1,0:T(1,128)}', space=vmem, size = 0x12000, scoped, tag = 'internal scratch']
  %s0 = inlined_call_operand.vmem [shape: f32[2,8,256], index: 0, kind: input, shape index: {}]
  %s1 = inlined_call_operand.vmem [shape: f32[8,8,256], index: 1, kind: input, shape index: {}]
  %s2 = inlined_call_operand.vmem [shape: f32[8,72], index: 2, kind: input, shape index: {}]
  %s3 = inlined_call_operand.vmem [shape: f32[8,1], index: 3, kind: input, shape index: {}]
  %s4 = inlined_call_operand.vmem [shape: f32[8,72], index: 4, kind: input, shape index: {}]
  %s5 = inlined_call_operand.vmem [shape: f32[8,1], index: 5, kind: input, shape index: {}]
  %s6 = inlined_call_operand.vmem [shape: f32[2,8,256], index: 6, kind: output, shape index: {}]
  %s7 = sld [smem:[#allocation0]]
  $region57: #{basic_block.1} parent=0
    _
  %s9 = ssub.s32 1, %s7
  %s10 = scalar_select 0, %s9, %s7
  loop: start=0, step=1, limit=4
  $region2: #{basic_block.1} parent=0 // loop_pre_header
    _
  $region3: #{basic_block.1} parent=0 // loop_header
    %s12 = sphi 0, %s16
    %p13 = scmp.ge.s32.totalorder %s12, 4
    %s22 = sphi 0, %s24
    %s25 = sphi 0, %s22
    %s26 = sphi 0, %s25
    %s42 = sphi 0, %s26
    %s46 = sphi 0, %s46
    %s48 = sphi 0, %s46
    %s49 = sphi 0, %s48
    %s63 = sphi 0, %s49
    %s67 = sphi 0, %s67
    %s69 = sphi 0, %s67
    %s70 = sphi 0, %s69
    %s84 = sphi 0, %s70
    %s88 = sphi 0, %s88
    %s90 = sphi 0, %s88
    %s91 = sphi 0, %s90
    %s105 = sphi 0, %s91
    %s109 = sphi 0, %s109
    %s111 = sphi 0, %s109
    %s112 = sphi 0, %s111
    %s126 = sphi 0, %s112
    %s130 = sphi 0, %s130
    %s132 = sphi 0, %s130
    %s133 = sphi 0, %s132
    %s147 = sphi 0, %s133
    %s153 = sphi 0, %s155
    %s156 = sphi 0, %s153
    %s157 = sphi 0, %s156
    %s173 = sphi 0, %s157
  $region4: #{basic_block.1} parent=0 // loop_header_branch
    %15 = sbr.rel (%p13) target = $region8
  $region5: #{basic_block.1} parent=0 // loop_body
    %s17 = ssub.s32 %s12, 1
    %s18 = ssub.s32 %s12, 2
    %s19 = sadd.s32 %s12, 1
    %s20 = ssub.s32 %s12, %s19
    %p21 = scmp.eq.s32.totalorder %s20, 0
    %s23 = sadd.s32 %s22, 1
    %s24 = scalar_select %p21, %s22, %s23
    %p27 = pneg %p21
    %p28 = scmp.eq.s32.totalorder %s12, 1
    %p29 = por %p27, %p28
    %p30 = scmp.ne.s32.totalorder %s22, %s25
    %p31 = scmp.eq.s32.totalorder %s12, 0
    %p32 = por %p30, %p31
    %p33 = scmp.ne.s32.totalorder %s22, %s25
    %p34 = scmp.eq.s32.totalorder %s17, 1
    %p35 = por %p33, %p34
    %p36 = scmp.ne.s32.totalorder %s25, %s26
    %p37 = scmp.eq.s32.totalorder %s17, 0
    %p38 = por %p36, %p37
    %p39 = scmp.ne.s32.totalorder %s25, %s26
    %p40 = scmp.eq.s32.totalorder %s18, 1
    %p41 = por %p39, %p40
    %p43 = scmp.ne.s32.totalorder %s26, %s42
    %p44 = scmp.eq.s32.totalorder %s18, 0
    %p45 = por %p43, %p44
    %s47 = sadd.s32 %s46, 1
    %p50 = scmp.eq.s32.totalorder %s12, 1
    %p51 = scmp.ne.s32.totalorder %s46, %s48
    %p52 = scmp.eq.s32.totalorder %s12, 0
    %p53 = por %p51, %p52
    %p54 = scmp.ne.s32.totalorder %s46, %s48
    %p55 = scmp.eq.s32.totalorder %s17, 1
    %p56 = por %p54, %p55
    %p57 = scmp.ne.s32.totalorder %s48, %s49
    %p58 = scmp.eq.s32.totalorder %s17, 0
    %p59 = por %p57, %p58
    %p60 = scmp.ne.s32.totalorder %s48, %s49
    %p61 = scmp.eq.s32.totalorder %s18, 1
    %p62 = por %p60, %p61
    %p64 = scmp.ne.s32.totalorder %s49, %s63
    %p65 = scmp.eq.s32.totalorder %s18, 0
    %p66 = por %p64, %p65
    %s68 = sadd.s32 %s67, 1
    %p71 = scmp.eq.s32.totalorder %s12, 1
    %p72 = scmp.ne.s32.totalorder %s67, %s69
    %p73 = scmp.eq.s32.totalorder %s12, 0
    %p74 = por %p72, %p73
    %p75 = scmp.ne.s32.totalorder %s67, %s69
    %p76 = scmp.eq.s32.totalorder %s17, 1
    %p77 = por %p75, %p76
    %p78 = scmp.ne.s32.totalorder %s69, %s70
    %p79 = scmp.eq.s32.totalorder %s17, 0
    %p80 = por %p78, %p79
    %p81 = scmp.ne.s32.totalorder %s69, %s70
    %p82 = scmp.eq.s32.totalorder %s18, 1
    %p83 = por %p81, %p82
    %p85 = scmp.ne.s32.totalorder %s70, %s84
    %p86 = scmp.eq.s32.totalorder %s18, 0
    %p87 = por %p85, %p86
    %s89 = sadd.s32 %s88, 1
    %p92 = scmp.eq.s32.totalorder %s12, 1
    %p93 = scmp.ne.s32.totalorder %s88, %s90
    %p94 = scmp.eq.s32.totalorder %s12, 0
    %p95 = por %p93, %p94
    %p96 = scmp.ne.s32.totalorder %s88, %s90
    %p97 = scmp.eq.s32.totalorder %s17, 1
    %p98 = por %p96, %p97
    %p99 = scmp.ne.s32.totalorder %s90, %s91
    %p100 = scmp.eq.s32.totalorder %s17, 0
    %p101 = por %p99, %p100
    %p102 = scmp.ne.s32.totalorder %s90, %s91
    %p103 = scmp.eq.s32.totalorder %s18, 1
    %p104 = por %p102, %p103
    %p106 = scmp.ne.s32.totalorder %s91, %s105
    %p107 = scmp.eq.s32.totalorder %s18, 0
    %p108 = por %p106, %p107
    %s110 = sadd.s32 %s109, 1
    %p113 = scmp.eq.s32.totalorder %s12, 1
    %p114 = scmp.ne.s32.totalorder %s109, %s111
    %p115 = scmp.eq.s32.totalorder %s12, 0
    %p116 = por %p114, %p115
    %p117 = scmp.ne.s32.totalorder %s109, %s111
    %p118 = scmp.eq.s32.totalorder %s17, 1
    %p119 = por %p117, %p118
    %p120 = scmp.ne.s32.totalorder %s111, %s112
    %p121 = scmp.eq.s32.totalorder %s17, 0
    %p122 = por %p120, %p121
    %p123 = scmp.ne.s32.totalorder %s111, %s112
    %p124 = scmp.eq.s32.totalorder %s18, 1
    %p125 = por %p123, %p124
    %p127 = scmp.ne.s32.totalorder %s112, %s126
    %p128 = scmp.eq.s32.totalorder %s18, 0
    %p129 = por %p127, %p128
    %s131 = sadd.s32 %s130, 1
    %p134 = scmp.eq.s32.totalorder %s12, 1
    %p135 = scmp.ne.s32.totalorder %s130, %s132
    %p136 = scmp.eq.s32.totalorder %s12, 0
    %p137 = por %p135, %p136
    %p138 = scmp.ne.s32.totalorder %s130, %s132
    %p139 = scmp.eq.s32.totalorder %s17, 1
    %p140 = por %p138, %p139
    %p141 = scmp.ne.s32.totalorder %s132, %s133
    %p142 = scmp.eq.s32.totalorder %s17, 0
    %p143 = por %p141, %p142
    %p144 = scmp.ne.s32.totalorder %s132, %s133
    %p145 = scmp.eq.s32.totalorder %s18, 1
    %p146 = por %p144, %p145
    %p148 = scmp.ne.s32.totalorder %s133, %s147
    %p149 = scmp.eq.s32.totalorder %s18, 0
    %p150 = por %p148, %p149
    %s151 = ssub.s32 %s12, %s19
    %p152 = scmp.eq.s32.totalorder %s151, 0
    %s154 = sadd.s32 %s153, 1
    %s155 = scalar_select %p152, %s153, %s154
    %p158 = pneg %p152
    %p159 = scmp.eq.s32.totalorder %s12, 1
    %p160 = por %p158, %p159
    %p161 = scmp.ne.s32.totalorder %s153, %s156
    %p162 = scmp.eq.s32.totalorder %s12, 0
    %p163 = por %p161, %p162
    %p164 = scmp.ne.s32.totalorder %s153, %s156
    %p165 = scmp.eq.s32.totalorder %s17, 1
    %p166 = por %p164, %p165
    %p167 = scmp.ne.s32.totalorder %s156, %s157
    %p168 = scmp.eq.s32.totalorder %s17, 0
    %p169 = por %p167, %p168
    %p170 = scmp.ne.s32.totalorder %s156, %s157
    %p171 = scmp.eq.s32.totalorder %s18, 1
    %p172 = por %p170, %p171
    %p174 = scmp.ne.s32.totalorder %s157, %s173
    %p175 = scmp.eq.s32.totalorder %s18, 0
    %p176 = por %p174, %p175
    %p177 = scmp.le.s32.totalorder 1, %s12
    %p178 = scmp.lt.s32.totalorder %s12, 3
    %p179 = pnand %p177, %p178
    %p180 = pneg %p179
    // Predicated region
    $region9: #{basic_block.1} parent=5 // pred_check
      _
    $region10: #{basic_block.1} parent=5 // pred_check_branch
      %182 = sbr.rel (%p179) target = $region12
    $region11: #{basic_block.1} parent=5 // pred_region
      %s183 = ssub.s32 %s12, 1
      // Predicated region
      $region13: #{basic_block.1} parent=11 // pred_check
        %p184 = pneg %p59
      $region14: #{basic_block.1} parent=11 // pred_check_branch
        %186 = sbr.rel (%p184) target = $region16
      $region15: #{basic_block.1} parent=11 // pred_region
        _
      $region16: #{basic_block.1} parent=11 // pred_fallthru
        _
      // Predicated region
      $region17: #{basic_block.1} parent=11 // pred_check
        %p187 = pneg %p80
      $region18: #{basic_block.1} parent=11 // pred_check_branch
        %189 = sbr.rel (%p187) target = $region20
      $region19: #{basic_block.1} parent=11 // pred_region
        _
      $region20: #{basic_block.1} parent=11 // pred_fallthru
        _
      // Predicated region
      $region21: #{basic_block.1} parent=11 // pred_check
        %p190 = pneg %p101
      $region22: #{basic_block.1} parent=11 // pred_check_branch
        %192 = sbr.rel (%p190) target = $region24
      $region23: #{basic_block.1} parent=11 // pred_region
        _
      $region24: #{basic_block.1} parent=11 // pred_fallthru
        _
      // Predicated region
      $region25: #{basic_block.1} parent=11 // pred_check
        %p193 = pneg %p122
      $region26: #{basic_block.1} parent=11 // pred_check_branch
        %195 = sbr.rel (%p193) target = $region28
      $region27: #{basic_block.1} parent=11 // pred_region
        _
      $region28: #{basic_block.1} parent=11 // pred_fallthru
        _
      // Predicated region
      $region29: #{basic_block.1} parent=11 // pred_check
        %p196 = pneg %p143
      $region30: #{basic_block.1} parent=11 // pred_check_branch
        %198 = sbr.rel (%p196) target = $region32
      $region31: #{basic_block.1} parent=11 // pred_region
        _
      $region32: #{basic_block.1} parent=11 // pred_fallthru
        _
    $region12: #{basic_block.1} parent=5 // pred_fallthru
      _
    %p199 = scmp.lt.s32.totalorder %s12, 2
    // Predicated region
    $region33: #{basic_block.1} parent=5 // pred_check
      %p200 = pneg %p199
    $region34: #{basic_block.1} parent=5 // pred_check_branch
      %202 = sbr.rel (%p200) target = $region36
    $region35: #{basic_block.1} parent=5 // pred_region
      // Predicated region
      $region37: #{basic_block.1} parent=35 // pred_check
        %p203 = pneg %p32
      $region38: #{basic_block.1} parent=35 // pred_check_branch
        %205 = sbr.rel (%p203) target = $region40
      $region39: #{basic_block.1} parent=35 // pred_region
        %p206 = scmp.lt.s32.totalorder %s12, 1
        %s207 = scalar_select %p206, %s12, 1
        %s208 = smul.addr %s207, 2
        %s209 = smul.addr %s208, 8
        %s210 = scalar_lea.vmem %s0, %s209
      $region40: #{basic_block.1} parent=35 // pred_fallthru
        _
    $region36: #{basic_block.1} parent=5 // pred_fallthru
      _
    %p211 = scmp.le.s32.totalorder 1, %s12
    %p212 = scmp.lt.s32.totalorder %s12, 3
    %p213 = pnand %p211, %p212
    %p214 = pneg %p213
    // Predicated region
    $region41: #{basic_block.1} parent=5 // pred_check
      _
    $region42: #{basic_block.1} parent=5 // pred_check_branch
      %216 = sbr.rel (%p213) target = $region44
    $region43: #{basic_block.1} parent=5 // pred_region
      %s217 = ssub.s32 %s12, 1
      %p218 = scmp.lt.s32.totalorder %s17, 1
      %s219 = scalar_select %p218, %s17, 1
      %s220 = smul.addr %s219, 2
      %s221 = smul.addr %s220, 8
      %s222 = scalar_lea.vmem %s0, %s221
      %p223 = pneg %p38
      %p224 = pneg %p35
      %p225 = pneg %p59
      %p226 = pneg %p56
      %p227 = pneg %p80
      %p228 = pneg %p77
      %p229 = pneg %p101
      %p230 = pneg %p98
      %p231 = pneg %p122
      %p232 = pneg %p119
      %p233 = pneg %p143
      %p234 = pneg %p140
      %p235 = pneg %p169
      %p236 = pneg %p166
      %p237 = scmp.lt.s32.totalorder %s17, 1
      %s238 = scalar_select %p237, %s17, 1
      %s239 = smul.addr %s238, 2
      %s240 = smul.addr %s239, 8
      %s241 = scalar_lea.vmem %s6, %s240
      %p242 = scmp.lt.s32.totalorder %s17, 1
      %s243 = scalar_select %p242, %s17, 1
      %s244 = smul.addr %s243, 2
      %s245 = smul.addr %s244, 8
      %s246 = scalar_lea.vmem %s0, %s245
      %p247 = scmp.lt.s32.totalorder %s17, 1
      %s248 = scalar_select %p247, %s17, 1
      %s249 = smul.addr %s248, 2
      %s250 = smul.addr %s249, 8
      %s251 = scalar_lea.vmem %s6, %s250
      %v252 = vld [vmem:[%s246] sm:$0xff]
      %v253 = vld [vmem:[%s246 + $0x8] sm:$0xff]
      %254 = vrot.lane.b32.xlu0 %v252, 17
      %v255 = vpop.permute.xlu0 %254
      %256 = vrot.lane.b32.xlu0 %v253, 17
      %v257 = vpop.permute.xlu0 %256
      %v258 = vlaneseq
      %v259 = vand.u32 %v258, 127
      %vm260 = vcmp.lt.s32.totalorder %v259, 17
      %v261 = vsel %vm260, %v255, %v257
      %v262 = vsel %vm260, %v257, %v255
      %v263 = vld [vmem:[%s1] sm:$0xff]
      %v264 = vld [vmem:[%s1 + $0x8] sm:$0xff]
      %v265 = vmul.f32 %v262, %v263
      %v266 = vmul.f32 %v261, %v264
      %267 = vrot.lane.b32.xlu0 %v252, 16
      %v268 = vpop.permute.xlu0 %267
      %269 = vrot.lane.b32.xlu0 %v253, 16
      %v270 = vpop.permute.xlu0 %269
      %vm271 = vcmp.lt.s32.totalorder %v259, 16
      %v272 = vsel %vm271, %v268, %v270
      %v273 = vsel %vm271, %v270, %v268
      %s274 = scalar_lea.vmem %s1, 16
      %v275 = vld [vmem:[%s274] sm:$0xff]
      %v276 = vld [vmem:[%s274 + $0x8] sm:$0xff]
      %v277 = vmul.f32 %v273, %v275
      %v278 = vmul.f32 %v272, %v276
      %279 = vrot.lane.b32.xlu0 %v252, 15
      %v280 = vpop.permute.xlu0 %279
      %281 = vrot.lane.b32.xlu0 %v253, 15
      %v282 = vpop.permute.xlu0 %281
      %vm283 = vcmp.lt.s32.totalorder %v259, 15
      %v284 = vsel %vm283, %v280, %v282
      %v285 = vsel %vm283, %v282, %v280
      %s286 = scalar_lea.vmem %s1, 32
      %v287 = vld [vmem:[%s286] sm:$0xff]
      %v288 = vld [vmem:[%s286 + $0x8] sm:$0xff]
      %v289 = vmul.f32 %v285, %v287
      %v290 = vmul.f32 %v284, %v288
      %291 = vrot.lane.b32.xlu0 %v252, 1
      %v292 = vpop.permute.xlu0 %291
      %293 = vrot.lane.b32.xlu0 %v253, 1
      %v294 = vpop.permute.xlu0 %293
      %vm295 = vcmp.lt.s32.totalorder %v259, 1
      %v296 = vsel %vm295, %v292, %v294
      %v297 = vsel %vm295, %v294, %v292
      %s298 = scalar_lea.vmem %s1, 48
      %v299 = vld [vmem:[%s298] sm:$0xff]
      %v300 = vld [vmem:[%s298 + $0x8] sm:$0xff]
      %v301 = vmul.f32 %v297, %v299
      %v302 = vmul.f32 %v296, %v300
      %303 = vrot.lane.b32.xlu0 %v252, 127
      %v304 = vpop.permute.xlu0 %303
      %305 = vrot.lane.b32.xlu0 %v253, 127
      %v306 = vpop.permute.xlu0 %305
      %vm307 = vcmp.lt.s32.totalorder %v259, 127
      %v308 = vsel %vm307, %v304, %v306
      %v309 = vsel %vm307, %v306, %v304
      %s310 = scalar_lea.vmem %s1, 64
      %v311 = vld [vmem:[%s310] sm:$0xff]
      %v312 = vld [vmem:[%s310 + $0x8] sm:$0xff]
      %v313 = vmul.f32 %v308, %v311
      %v314 = vmul.f32 %v309, %v312
      %315 = vrot.lane.b32.xlu0 %v252, 113
      %v316 = vpop.permute.xlu0 %315
      %317 = vrot.lane.b32.xlu0 %v253, 113
      %v318 = vpop.permute.xlu0 %317
      %vm319 = vcmp.lt.s32.totalorder %v259, 113
      %v320 = vsel %vm319, %v316, %v318
      %v321 = vsel %vm319, %v318, %v316
      %s322 = scalar_lea.vmem %s1, 80
      %v323 = vld [vmem:[%s322] sm:$0xff]
      %v324 = vld [vmem:[%s322 + $0x8] sm:$0xff]
      %v325 = vmul.f32 %v320, %v323
      %v326 = vmul.f32 %v321, %v324
      %327 = vrot.lane.b32.xlu0 %v252, 112
      %v328 = vpop.permute.xlu0 %327
      %329 = vrot.lane.b32.xlu0 %v253, 112
      %v330 = vpop.permute.xlu0 %329
      %vm331 = vcmp.lt.s32.totalorder %v259, 112
      %v332 = vsel %vm331, %v328, %v330
      %v333 = vsel %vm331, %v330, %v328
      %s334 = scalar_lea.vmem %s1, 96
      %v335 = vld [vmem:[%s334] sm:$0xff]
      %v336 = vld [vmem:[%s334 + $0x8] sm:$0xff]
      %v337 = vmul.f32 %v332, %v335
      %v338 = vmul.f32 %v333, %v336
      %339 = vrot.lane.b32.xlu0 %v252, 111
      %v340 = vpop.permute.xlu0 %339
      %341 = vrot.lane.b32.xlu0 %v253, 111
      %v342 = vpop.permute.xlu0 %341
      %vm343 = vcmp.lt.s32.totalorder %v259, 111
      %v344 = vsel %vm343, %v340, %v342
      %v345 = vsel %vm343, %v342, %v340
      %s346 = scalar_lea.vmem %s1, 112
      %v347 = vld [vmem:[%s346] sm:$0xff]
      %v348 = vld [vmem:[%s346 + $0x8] sm:$0xff]
      %v349 = vmul.f32 %v344, %v347
      %v350 = vmul.f32 %v345, %v348
      %v351 = vld [vmem:[%s2] sm:$0xff]
      %v352 = vld [vmem:[%s3] sm:$0xff]
      %354 = vset.pattern.permute.xlu0 0
      %355 = vperm.xlu0 %354, %v352
      %v356 = vpop.permute.xlu0 %355
      %vm358 = vcmask 588800
      %v360 = vsel %vm358, %v351, 0
      %362 = vmatprep.subr.mxu0 0.0
      %363 = vmatpush1.msra.mxu0 0.0
      %364 = vmatprep.subr.mxu0 0.0
      %365 = vmatpush1.msra.mxu0 0.0
      %366 = vmatprep.subr.mxu0 0.0
      %367 = vmatpush1.msra.mxu0 0.0
      %368 = vmatprep.subr.mxu0 0.0
      %369 = vmatpush1.msra.mxu0 0.0
      %370 = vmatprep.subr.mxu0 0.0
      %371 = vmatpush1.msra.mxu0 0.0
      %372 = vmatprep.subr.mxu0 0.0
      %373 = vmatpush1.msra.mxu0 0.0
      %374 = vmatprep.subr.mxu0 0.0
      %375 = vmatpush1.msra.mxu0 0.0
      %376 = vmatprep.subr.mxu0 %v350
      %377 = vmatpush1.msra.mxu0 %v349
      %378 = vmatprep.subr.mxu0 %v338
      %379 = vmatpush1.msra.mxu0 %v337
      %380 = vmatprep.subr.mxu0 %v326
      %381 = vmatpush1.msra.mxu0 %v325
      %382 = vmatprep.subr.mxu0 %v314
      %383 = vmatpush1.msra.mxu0 %v313
      %384 = vmatprep.subr.mxu0 %v253
      %385 = vmatpush1.msra.mxu0 %v252
      %386 = vmatprep.subr.mxu0 %v302
      %387 = vmatpush1.msra.mxu0 %v301
      %388 = vmatprep.subr.mxu0 %v290
      %389 = vmatpush1.msra.mxu0 %v289
      %390 = vmatprep.subr.mxu0 %v278
      %391 = vmatpush1.msra.mxu0 %v277
      %392 = vmatprep.subr.mxu0 %v266
      %393 = vmatpush1.msra.mxu0 %v265
      %394 = vmatprep.subr.mxu0 0.0
      %395 = vmatpush2.msra.mxu0 0.0
      %396 = vmatprep.subr.mxu0 0.0
      %397 = vmatpush2.msra.mxu0 0.0
      %398 = vmatprep.subr.mxu0 0.0
      %399 = vmatpush2.msra.mxu0 0.0
      %400 = vmatprep.subr.mxu0 0.0
      %401 = vmatpush2.msra.mxu0 0.0
      %402 = vmatprep.subr.mxu0 0.0
      %403 = vmatpush2.msra.mxu0 0.0
      %404 = vmatprep.subr.mxu0 0.0
      %405 = vmatpush2.msra.mxu0 0.0
      %406 = vmatprep.subr.mxu0 0.0
      %407 = vmatpush2.msra.mxu0 0.0
      %408 = vmatprep.subr.mxu0 0.0
      %409 = vmatpush2.msra.mxu0 0.0
      %410 = vmatprep.subr.mxu0 0.0
      %411 = vmatpush2.msra.mxu0 0.0
      %412 = vmatprep.subr.mxu0 0.0
      %413 = vmatpush2.msra.mxu0 0.0
      %414 = vmatprep.subr.mxu0 0.0
      %415 = vmatpush2.msra.mxu0 0.0
      %416 = vmatprep.subr.mxu0 0.0
      %417 = vmatpush2.msra.mxu0 0.0
      %418 = vmatprep.subr.mxu0 0.0
      %419 = vmatpush2.msra.mxu0 0.0
      %420 = vmatprep.subr.mxu0 0.0
      %421 = vmatpush2.msra.mxu0 0.0
      %422 = vmatprep.subr.mxu0 0.0
      %423 = vmatpush2.msra.mxu0 0.0
      %424 = vmatprep.subr.mxu0 0.0
      %425 = vmatpush2.msra.mxu0 0.0
      %426 = vmatprep.mubr.f32.mxu0 0.0
      %427 = vmatmul.mubr.f32.gmra.mxu0 %v360
      %v428 = vpop.f32.mrf.mxu0
      %v429 = vadd.f32 %v356, %v428
      %v430 = vpop.f32.mrf.mxu0
      %v431 = vadd.f32 %v356, %v430
      %432 = vdwg.mxu0
      %v433 = vmax.f32 %v429, 0.0
      %v434 = vmax.f32 %v431, 0.0
      %435 = vrot.lane.b32.xlu0 %v433, 17
      %v436 = vpop.permute.xlu0 %435
      %437 = vrot.lane.b32.xlu0 %v434, 17
      %v438 = vpop.permute.xlu0 %437
      %v439 = vsel %vm260, %v436, %v438
      %v440 = vsel %vm260, %v438, %v436
      %v441 = vmul.f32 %v440, %v263
      %v442 = vmul.f32 %v439, %v264
      %443 = vrot.lane.b32.xlu0 %v433, 16
      %v444 = vpop.permute.xlu0 %443
      %445 = vrot.lane.b32.xlu0 %v434, 16
      %v446 = vpop.permute.xlu0 %445
      %v447 = vsel %vm271, %v444, %v446
      %v448 = vsel %vm271, %v446, %v444
      %v449 = vmul.f32 %v448, %v275
      %v450 = vmul.f32 %v447, %v276
      %451 = vrot.lane.b32.xlu0 %v433, 15
      %v452 = vpop.permute.xlu0 %451
      %453 = vrot.lane.b32.xlu0 %v434, 15
      %v454 = vpop.permute.xlu0 %453
      %v455 = vsel %vm283, %v452, %v454
      %v456 = vsel %vm283, %v454, %v452
      %v457 = vmul.f32 %v456, %v287
      %v458 = vmul.f32 %v455, %v288
      %459 = vrot.lane.b32.xlu0 %v433, 1
      %v460 = vpop.permute.xlu0 %459
      %461 = vrot.lane.b32.xlu0 %v434, 1
      %v462 = vpop.permute.xlu0 %461
      %v463 = vsel %vm295, %v460, %v462
      %v464 = vsel %vm295, %v462, %v460
      %v465 = vmul.f32 %v464, %v299
      %v466 = vmul.f32 %v463, %v300
      %467 = vrot.lane.b32.xlu0 %v433, 127
      %v468 = vpop.permute.xlu0 %467
      %469 = vrot.lane.b32.xlu0 %v434, 127
      %v470 = vpop.permute.xlu0 %469
      %v471 = vsel %vm307, %v468, %v470
      %v472 = vsel %vm307, %v470, %v468
      %v473 = vmul.f32 %v471, %v311
      %v474 = vmul.f32 %v472, %v312
      %475 = vrot.lane.b32.xlu0 %v433, 113
      %v476 = vpop.permute.xlu0 %475
      %477 = vrot.lane.b32.xlu0 %v434, 113
      %v478 = vpop.permute.xlu0 %477
      %v479 = vsel %vm319, %v476, %v478
      %v480 = vsel %vm319, %v478, %v476
      %v481 = vmul.f32 %v479, %v323
      %v482 = vmul.f32 %v480, %v324
      %483 = vrot.lane.b32.xlu0 %v433, 112
      %v484 = vpop.permute.xlu0 %483
      %485 = vrot.lane.b32.xlu0 %v434, 112
      %v486 = vpop.permute.xlu0 %485
      %v487 = vsel %vm331, %v484, %v486
      %v488 = vsel %vm331, %v486, %v484
      %v489 = vmul.f32 %v487, %v335
      %v490 = vmul.f32 %v488, %v336
      %491 = vrot.lane.b32.xlu0 %v433, 111
      %v492 = vpop.permute.xlu0 %491
      %493 = vrot.lane.b32.xlu0 %v434, 111
      %v494 = vpop.permute.xlu0 %493
      %v495 = vsel %vm343, %v492, %v494
      %v496 = vsel %vm343, %v494, %v492
      %v497 = vmul.f32 %v495, %v347
      %v498 = vmul.f32 %v496, %v348
      %v499 = vld [vmem:[%s4] sm:$0xff]
      %v500 = vld [vmem:[%s5] sm:$0xff]
      %502 = vset.pattern.permute.xlu0 0
      %503 = vperm.xlu0 %502, %v500
      %v504 = vpop.permute.xlu0 %503
      %v507 = vsel %vm358, %v499, 0
      %509 = vmatprep.subr.mxu0 0.0
      %510 = vmatpush1.msra.mxu0 0.0
      %511 = vmatprep.subr.mxu0 0.0
      %512 = vmatpush1.msra.mxu0 0.0
      %513 = vmatprep.subr.mxu0 0.0
      %514 = vmatpush1.msra.mxu0 0.0
      %515 = vmatprep.subr.mxu0 0.0
      %516 = vmatpush1.msra.mxu0 0.0
      %517 = vmatprep.subr.mxu0 0.0
      %518 = vmatpush1.msra.mxu0 0.0
      %519 = vmatprep.subr.mxu0 0.0
      %520 = vmatpush1.msra.mxu0 0.0
      %521 = vmatprep.subr.mxu0 0.0
      %522 = vmatpush1.msra.mxu0 0.0
      %523 = vmatprep.subr.mxu0 %v498
      %524 = vmatpush1.msra.mxu0 %v497
      %525 = vmatprep.subr.mxu0 %v490
      %526 = vmatpush1.msra.mxu0 %v489
      %527 = vmatprep.subr.mxu0 %v482
      %528 = vmatpush1.msra.mxu0 %v481
      %529 = vmatprep.subr.mxu0 %v474
      %530 = vmatpush1.msra.mxu0 %v473
      %531 = vmatprep.subr.mxu0 %v434
      %532 = vmatpush1.msra.mxu0 %v433
      %533 = vmatprep.subr.mxu0 %v466
      %534 = vmatpush1.msra.mxu0 %v465
      %535 = vmatprep.subr.mxu0 %v458
      %536 = vmatpush1.msra.mxu0 %v457
      %537 = vmatprep.subr.mxu0 %v450
      %538 = vmatpush1.msra.mxu0 %v449
      %539 = vmatprep.subr.mxu0 %v442
      %540 = vmatpush1.msra.mxu0 %v441
      %541 = vmatprep.subr.mxu0 0.0
      %542 = vmatpush2.msra.mxu0 0.0
      %543 = vmatprep.subr.mxu0 0.0
      %544 = vmatpush2.msra.mxu0 0.0
      %545 = vmatprep.subr.mxu0 0.0
      %546 = vmatpush2.msra.mxu0 0.0
      %547 = vmatprep.subr.mxu0 0.0
      %548 = vmatpush2.msra.mxu0 0.0
      %549 = vmatprep.subr.mxu0 0.0
      %550 = vmatpush2.msra.mxu0 0.0
      %551 = vmatprep.subr.mxu0 0.0
      %552 = vmatpush2.msra.mxu0 0.0
      %553 = vmatprep.subr.mxu0 0.0
      %554 = vmatpush2.msra.mxu0 0.0
      %555 = vmatprep.subr.mxu0 0.0
      %556 = vmatpush2.msra.mxu0 0.0
      %557 = vmatprep.subr.mxu0 0.0
      %558 = vmatpush2.msra.mxu0 0.0
      %559 = vmatprep.subr.mxu0 0.0
      %560 = vmatpush2.msra.mxu0 0.0
      %561 = vmatprep.subr.mxu0 0.0
      %562 = vmatpush2.msra.mxu0 0.0
      %563 = vmatprep.subr.mxu0 0.0
      %564 = vmatpush2.msra.mxu0 0.0
      %565 = vmatprep.subr.mxu0 0.0
      %566 = vmatpush2.msra.mxu0 0.0
      %567 = vmatprep.subr.mxu0 0.0
      %568 = vmatpush2.msra.mxu0 0.0
      %569 = vmatprep.subr.mxu0 0.0
      %570 = vmatpush2.msra.mxu0 0.0
      %571 = vmatprep.subr.mxu0 0.0
      %572 = vmatpush2.msra.mxu0 0.0
      %573 = vmatprep.mubr.f32.mxu0 0.0
      %574 = vmatmul.mubr.f32.gmra.mxu0 %v507
      %v575 = vpop.f32.mrf.mxu0
      %v576 = vadd.f32 %v504, %v575
      %v577 = vpop.f32.mrf.mxu0
      %v578 = vadd.f32 %v504, %v577
      %579 = vdwg.mxu0
      %v580 = vadd.f32 %v576, %v252
      %v581 = vadd.f32 %v578, %v253
      %v582 = vmax.f32 %v580, 0.0
      %v583 = vmax.f32 %v581, 0.0
      %584 = vst [vmem:[%s251] sm:$0xff] %v582
      %585 = vst [vmem:[%s251 + $0x8] sm:$0xff] %v583
      %p586 = scmp.lt.s32.totalorder %s17, 1
      %s587 = scalar_select %p586, %s17, 1
      %s588 = smul.addr %s587, 2
      %s589 = smul.addr %s588, 8
      %s590 = scalar_lea.vmem %s6, %s589
      // Predicated region
      $region45: #{basic_block.1} parent=43 // pred_check
        %p591 = pneg %p166
      $region46: #{basic_block.1} parent=43 // pred_check_branch
        %593 = sbr.rel (%p591) target = $region48
      $region47: #{basic_block.1} parent=43 // pred_region
        _
      $region48: #{basic_block.1} parent=43 // pred_fallthru
        _
    $region44: #{basic_block.1} parent=5 // pred_fallthru
      _
    %p594 = scmp.le.s32.totalorder 2, %s12
    // Predicated region
    $region49: #{basic_block.1} parent=5 // pred_check
      %p595 = pneg %p594
    $region50: #{basic_block.1} parent=5 // pred_check_branch
      %597 = sbr.rel (%p595) target = $region52
    $region51: #{basic_block.1} parent=5 // pred_region
      %s598 = ssub.s32 %s12, 2
      // Predicated region
      $region53: #{basic_block.1} parent=51 // pred_check
        %p599 = pneg %p172
      $region54: #{basic_block.1} parent=51 // pred_check_branch
        %601 = sbr.rel (%p599) target = $region56
      $region55: #{basic_block.1} parent=51 // pred_region
        %p602 = scmp.lt.s32.totalorder %s18, 1
        %s603 = scalar_select %p602, %s18, 1
        %s604 = smul.addr %s603, 2
        %s605 = smul.addr %s604, 8
        %s606 = scalar_lea.vmem %s6, %s605
      $region56: #{basic_block.1} parent=51 // pred_fallthru
        _
    $region52: #{basic_block.1} parent=5 // pred_fallthru
      _
  $region6: #{basic_block.1} parent=0 // loop_footer
    %s16 = sadd.s32 1, %s12
  $region7: #{basic_block.1} parent=0 // loop_footer_branch
    %11 = sbr.rel target = $region3
  $region8: #{basic_block.1} parent=0 // loop_exit
    _

</llo_original>
